<compile_context>
chip_gen: v5e
topology: v5e:2x2
jax: 0.10.0
libtpu: 0.0.40
codegen_flags: <defaults>
</compile_context>

<pallas_src>
import jax
import jax.numpy as jnp
from jax.experimental import pallas as pl
from jax.experimental.pallas import tpu as pltpu

STATE_SIZE = 8
HIDDEN = 24
ACTION_SIZE = 4

LANES = 128
H1P = 32           # padded hidden rows: 24 real + 1 carried-one + 7 zero
OUT_ROWS = 8       # padded output rows: 4 real + 4 zero
ONE_ROW = HIDDEN   # index of the carried constant-1 row inside h1 / h2


def pack_params(params):
    """Pack PyTorch-style (out, in) weights/biases for the transposed kernel."""
    w1, b1, w2, b2, w3, b3 = params   # (24,8),(24,),(24,24),(24,),(4,24),(4,)
    W1 = jnp.zeros((H1P, STATE_SIZE), jnp.float32).at[:HIDDEN, :].set(w1)
    B1 = (jnp.zeros((H1P, 1), jnp.float32)
          .at[:HIDDEN, 0].set(b1)
          .at[ONE_ROW, 0].set(1.0))           # -> h1[ONE_ROW, :] == 1 after ReLU
    W2 = (jnp.zeros((H1P, H1P), jnp.float32)
          .at[:HIDDEN, :HIDDEN].set(w2)
          .at[:HIDDEN, ONE_ROW].set(b2)       # b2 rides the carried-one row
          .at[ONE_ROW, ONE_ROW].set(1.0))     # re-carry the one into h2
    W3 = (jnp.zeros((OUT_ROWS, H1P), jnp.float32)
          .at[:ACTION_SIZE, :HIDDEN].set(w3)
          .at[:ACTION_SIZE, ONE_ROW].set(b3)) # b3 rides the carried-one row
    return (W1, B1, W2, W3)


def dqn_kernel(x_ref, w1_ref, b1_ref, w2_ref, w3_ref, out_ref):
    x = x_ref[...]                                                # (8, TB), lane-dense
    h1 = jnp.maximum(
        jnp.dot(w1_ref[...], x, preferred_element_type=jnp.float32) + b1_ref[...],
        0.0)                                                      # (32, TB); row 24 == 1
    h2 = jnp.maximum(
        jnp.dot(w2_ref[...], h1, preferred_element_type=jnp.float32),
        0.0)                                                      # (32, TB); row 24 == 1
    out_ref[...] = jnp.dot(w3_ref[...], h2,
                           preferred_element_type=jnp.float32)    # (8, TB), dense store


def _round_up(n, m):
    return ((n + m - 1) // m) * m


def _batch_dim_semantics():
    # v7x has 2 TensorCores per chip: CORE_PARALLEL actually splits the batch
    # grid axis across them (plain "parallel" is measured as a near-no-op).
    # Single-TC v5e/v6e keep plain "parallel".
    try:
        kind = jax.devices()[0].device_kind.lower()
    except Exception:
        kind = ""
    if "v7" in kind:
        return (pltpu.CORE_PARALLEL,)
    return ("parallel",)


def dqn_forward(x, packed, *, tb=4096):
    """Batched DQN forward: x (B, 8) -> (B, 4). `packed` from pack_params()."""
    W1, B1, W2, W3 = packed
    B = x.shape[0]
    # Batch tile: multiple of 128 (it is the lane axis), capped at `tb`.
    TB = min(_round_up(max(B, 1), LANES), _round_up(tb, LANES))
    Bp = _round_up(B, TB)

    # Lane-dense, feature-major input slab (8, Bp).  Padded columns are zero
    # and their outputs are discarded below (layout plumbing only).
    xt = jnp.zeros((STATE_SIZE, Bp), jnp.float32).at[:, :B].set(x.T)

    out_t = pl.pallas_call(
        dqn_kernel,
        out_shape=jax.ShapeDtypeStruct((OUT_ROWS, Bp), jnp.float32),
        grid=(Bp // TB,),
        in_specs=[
            pl.BlockSpec((STATE_SIZE, TB), lambda i: (0, i)),    # streamed batch tiles
            pl.BlockSpec((H1P, STATE_SIZE), lambda i: (0, 0)),   # resident W1
            pl.BlockSpec((H1P, 1), lambda i: (0, 0)),            # resident b1 (+carried 1)
            pl.BlockSpec((H1P, H1P), lambda i: (0, 0)),          # resident W2 (b2 folded)
            pl.BlockSpec((OUT_ROWS, H1P), lambda i: (0, 0)),     # resident W3 (b3 folded)
        ],
        out_specs=pl.BlockSpec((OUT_ROWS, TB), lambda i: (0, i)),
        compiler_params=pltpu.CompilerParams(
            dimension_semantics=_batch_dim_semantics()),
    )(xt, W1, B1, W2, W3)

    return out_t[:ACTION_SIZE, :B].T


def init_params(key):
    # PyTorch nn.Linear default init: U[-1/sqrt(fan_in), +1/sqrt(fan_in)],
    # weights stored (out_features, in_features).
    def linear(key, fan_in, fan_out):
        kw, kb = jax.random.split(key)
        bound = 1.0 / (fan_in ** 0.5)
        w = jax.random.uniform(kw, (fan_out, fan_in), jnp.float32, -bound, bound)
        b = jax.random.uniform(kb, (fan_out,), jnp.float32, -bound, bound)
        return w, b

    k1, k2, k3 = jax.random.split(key, 3)
    w1, b1 = linear(k1, STATE_SIZE, HIDDEN)
    w2, b2 = linear(k2, HIDDEN, HIDDEN)
    w3, b3 = linear(k3, HIDDEN, ACTION_SIZE)
    return (w1, b1, w2, b2, w3, b3)


def dqn_reference(x, params):
    w1, b1, w2, b2, w3, b3 = params
    h1 = jnp.maximum(x @ w1.T + b1, 0.0)
    h2 = jnp.maximum(h1 @ w2.T + b2, 0.0)
    return h2 @ w3.T + b3


if __name__ == "__main__":
    key = jax.random.PRNGKey(0)
    kx1, kx2, kp = jax.random.split(key, 3)

    params = init_params(kp)
    packed = pack_params(params)

    # Case 1: tiny action-selection batch (B=4) -> single grid step.
    x_small = jax.random.normal(kx1, (4, STATE_SIZE), jnp.float32)
    out_small = jax.block_until_ready(dqn_forward(x_small, packed))
    ref_small = dqn_reference(x_small, params)
    assert out_small.shape == (4, ACTION_SIZE)
    assert jnp.allclose(out_small, ref_small, atol=1e-4, rtol=1e-4), "mismatch (small batch)"

    # Case 2: multi-tile grid (B=300, TB=128 -> 3 grid steps including a padded
    # remainder tile) to exercise streaming tiles + resident weights.
    x_batch = jax.random.normal(kx2, (300, STATE_SIZE), jnp.float32)
    out_batch = jax.block_until_ready(dqn_forward(x_batch, packed, tb=128))
    ref_batch = dqn_reference(x_batch, params)
    assert out_batch.shape == (300, ACTION_SIZE)
    assert jnp.allclose(out_batch, ref_batch, atol=1e-4, rtol=1e-4), "mismatch (batch grid)"

    print("KERNEL_OK")
</pallas_src>

<mosaic_0001>
module attributes {stable_mosaic.version = 11 : i64} {
  func.func @dqn_kernel(%arg0: i32, %arg1: memref<8x128xf32, #tpu.memory_space<vmem>>, %arg2: memref<32x8xf32, #tpu.memory_space<vmem>>, %arg3: memref<32x1xf32, #tpu.memory_space<vmem>>, %arg4: memref<32x32xf32, #tpu.memory_space<vmem>>, %arg5: memref<8x32xf32, #tpu.memory_space<vmem>>, %arg6: memref<8x128xf32, #tpu.memory_space<vmem>>) attributes {dimension_semantics = [#tpu.dimension_semantics<parallel>], iteration_bounds = array<i64: 1>, scalar_prefetch = 0 : i64, scratch_operands = 0 : i64, tpu.core_type = #tpu.core_type<tc>, window_params = [{transform_indices = @transform_0, window_bounds = array<i64: 8, 128>}, {pipeline_mode = #tpu.pipeline_mode<synchronous>, transform_indices = @transform_1, window_bounds = array<i64: 32, 8>}, {pipeline_mode = #tpu.pipeline_mode<synchronous>, transform_indices = @transform_2, window_bounds = array<i64: 32, 1>}, {pipeline_mode = #tpu.pipeline_mode<synchronous>, transform_indices = @transform_3, window_bounds = array<i64: 32, 32>}, {pipeline_mode = #tpu.pipeline_mode<synchronous>, transform_indices = @transform_4, window_bounds = array<i64: 8, 32>}, {transform_indices = @transform_5, window_bounds = array<i64: 8, 128>}]} {
    %c0 = arith.constant 0 : index
    %c0_0 = arith.constant 0 : index
    %0 = vector.load %arg1[%c0, %c0_0] : memref<8x128xf32, #tpu.memory_space<vmem>>, vector<8x128xf32>
    %c0_1 = arith.constant 0 : index
    %c0_2 = arith.constant 0 : index
    %1 = vector.load %arg2[%c0_1, %c0_2] : memref<32x8xf32, #tpu.memory_space<vmem>>, vector<32x8xf32>
    %cst = arith.constant dense<0.000000e+00> : vector<32x128xf32>
    %2 = tpu.matmul %1, %0, %cst {dimension_numbers = #tpu.dot_dimension_numbers<[1], [0], [0], [1], [0, 0, 1, 1], [], []>} : vector<32x8xf32>, vector<8x128xf32>, vector<32x128xf32> -> vector<32x128xf32>
    %c0_3 = arith.constant 0 : index
    %c0_4 = arith.constant 0 : index
    %3 = vector.load %arg3[%c0_3, %c0_4] : memref<32x1xf32, #tpu.memory_space<vmem>>, vector<32x1xf32>
    %4 = vector.broadcast %3 : vector<32x1xf32> to vector<32x128xf32>
    %5 = arith.addf %2, %4 : vector<32x128xf32>
    %cst_5 = arith.constant 0.000000e+00 : f32
    %6 = vector.broadcast %cst_5 : f32 to vector<32x128xf32>
    %7 = arith.maximumf %5, %6 : vector<32x128xf32>
    %c0_6 = arith.constant 0 : index
    %c0_7 = arith.constant 0 : index
    %8 = vector.load %arg4[%c0_6, %c0_7] : memref<32x32xf32, #tpu.memory_space<vmem>>, vector<32x32xf32>
    %cst_8 = arith.constant dense<0.000000e+00> : vector<32x128xf32>
    %9 = tpu.matmul %8, %7, %cst_8 {dimension_numbers = #tpu.dot_dimension_numbers<[1], [0], [0], [1], [0, 0, 1, 1], [], []>} : vector<32x32xf32>, vector<32x128xf32>, vector<32x128xf32> -> vector<32x128xf32>
    %cst_9 = arith.constant 0.000000e+00 : f32
    %10 = vector.broadcast %cst_9 : f32 to vector<32x128xf32>
    %11 = arith.maximumf %9, %10 : vector<32x128xf32>
    %c0_10 = arith.constant 0 : index
    %c0_11 = arith.constant 0 : index
    %12 = vector.load %arg5[%c0_10, %c0_11] : memref<8x32xf32, #tpu.memory_space<vmem>>, vector<8x32xf32>
    %cst_12 = arith.constant dense<0.000000e+00> : vector<8x128xf32>
    %13 = tpu.matmul %12, %11, %cst_12 {dimension_numbers = #tpu.dot_dimension_numbers<[1], [0], [0], [1], [0, 0, 1, 1], [], []>} : vector<8x32xf32>, vector<32x128xf32>, vector<8x128xf32> -> vector<8x128xf32>
    %c0_13 = arith.constant 0 : index
    %c0_14 = arith.constant 0 : index
    %14 = vector.load %arg6[%c0_13, %c0_14] : memref<8x128xf32, #tpu.memory_space<vmem>>, vector<8x128xf32>
    tpu.vector_store %arg6[%c0_13, %c0_14], %13 {strides = array<i32>} : memref<8x128xf32, #tpu.memory_space<vmem>>, vector<8x128xf32>,
    return
  }
  func.func @transform_0(%arg0: i32) -> (i32, i32) {
    %c0_i32 = arith.constant 0 : i32
    %c0_i32_0 = arith.constant 0 : i32
    return %c0_i32, %arg0 : i32, i32
  }
  func.func @transform_1(%arg0: i32) -> (i32, i32) {
    %c0_i32 = arith.constant 0 : i32
    %c0_i32_0 = arith.constant 0 : i32
    %c0_i32_1 = arith.constant 0 : i32
    return %c0_i32, %c0_i32_0 : i32, i32
  }
  func.func @transform_2(%arg0: i32) -> (i32, i32) {
    %c0_i32 = arith.constant 0 : i32
    %c0_i32_0 = arith.constant 0 : i32
    %c0_i32_1 = arith.constant 0 : i32
    return %c0_i32, %c0_i32_0 : i32, i32
  }
  func.func @transform_3(%arg0: i32) -> (i32, i32) {
    %c0_i32 = arith.constant 0 : i32
    %c0_i32_0 = arith.constant 0 : i32
    %c0_i32_1 = arith.constant 0 : i32
    return %c0_i32, %c0_i32_0 : i32, i32
  }
  func.func @transform_4(%arg0: i32) -> (i32, i32) {
    %c0_i32 = arith.constant 0 : i32
    %c0_i32_0 = arith.constant 0 : i32
    %c0_i32_1 = arith.constant 0 : i32
    return %c0_i32, %c0_i32_0 : i32, i32
  }
  func.func @transform_5(%arg0: i32) -> (i32, i32) {
    %c0_i32 = arith.constant 0 : i32
    %c0_i32_0 = arith.constant 0 : i32
    return %c0_i32, %arg0 : i32, i32
  }
}

</mosaic_0001>

<llo_original>
// kernel: tpu_custom_call.1
$region0: #{tpu_custom_call.1}
  #allocation0 [shape = 'u32[]', space=smem, size = 0x4, offset = 0x4, fixed_abs, tag = 'smem constant byte address 0x4 - core index']
  #allocation1 [shape = 'u32[72,128]{1,0:T(1,128)}', space=vmem, size = 0x9000, scoped, tag = 'internal scratch']
  %s0 = inlined_call_operand.vmem [shape: f32[8,128], index: 0, kind: input, shape index: {}]
  %s1 = inlined_call_operand.vmem [shape: f32[32,8], index: 1, kind: input, shape index: {}]
  %s2 = inlined_call_operand.vmem [shape: f32[32,1], index: 2, kind: input, shape index: {}]
  %s3 = inlined_call_operand.vmem [shape: f32[32,32], index: 3, kind: input, shape index: {}]
  %s4 = inlined_call_operand.vmem [shape: f32[8,32], index: 4, kind: input, shape index: {}]
  %s5 = inlined_call_operand.hbm [shape: f32[8,128], index: 5, kind: output, shape index: {}]
  %s6 = sld [smem:[#allocation0]]
  $region30: #{tpu_custom_call.1} parent=0
    _
  %s8 = ssub.s32 1, %s6
  %s9 = scalar_select 0, %s8, %s6
  $region1: #{tpu_custom_call.1} parent=0
    #allocation2 [shape = 'u8[4096]{0}', space=vmem, size = 0x1000, scoped, tag = 'output window, operand 0, single buffered']
    #allocation3 [shape = 's32[1]{0}', space=sflag, size = 0x4, scoped, tag = 'scoped memory for tpu_custom_call.1']
    %10 = vsyncpa [#allocation3], 0
    // Predicated region
    $region2: #{tpu_custom_call.1} parent=1 // pred_check
      _
    $region3: #{tpu_custom_call.1} parent=1 // pred_check_branch
      %12 = sbr.rel (0) target = $region5
    $region4: #{tpu_custom_call.1} parent=1 // pred_region
      _
    $region5: #{tpu_custom_call.1} parent=1 // pred_fallthru
      _
    // Predicated region
    $region6: #{tpu_custom_call.1} parent=1 // pred_check
      _
    $region7: #{tpu_custom_call.1} parent=1 // pred_check_branch
      %14 = sbr.rel (0) target = $region9
    $region8: #{tpu_custom_call.1} parent=1 // pred_region
      _
    $region9: #{tpu_custom_call.1} parent=1 // pred_fallthru
      _
    // Predicated region
    $region10: #{tpu_custom_call.1} parent=1 // pred_check
      _
    $region11: #{tpu_custom_call.1} parent=1 // pred_check_branch
      %16 = sbr.rel (0) target = $region13
    $region12: #{tpu_custom_call.1} parent=1 // pred_region
      _
    $region13: #{tpu_custom_call.1} parent=1 // pred_fallthru
      _
    // Predicated region
    $region14: #{tpu_custom_call.1} parent=1 // pred_check
      _
    $region15: #{tpu_custom_call.1} parent=1 // pred_check_branch
      %18 = sbr.rel (0) target = $region17
    $region16: #{tpu_custom_call.1} parent=1 // pred_region
      _
    $region17: #{tpu_custom_call.1} parent=1 // pred_fallthru
      _
    // Predicated region
    $region18: #{tpu_custom_call.1} parent=1 // pred_check
      _
    $region19: #{tpu_custom_call.1} parent=1 // pred_check_branch
      %20 = sbr.rel (0) target = $region21
    $region20: #{tpu_custom_call.1} parent=1 // pred_region
      _
    $region21: #{tpu_custom_call.1} parent=1 // pred_fallthru
      _
    %v21 = vld [vmem:[%s0] sm:$0xff]
    %v22 = vld [vmem:[%s1] sm:$0xff]
    %v23 = vld [vmem:[%s1 + $0x8] sm:$0xff]
    %v24 = vld [vmem:[%s1 + $0x10] sm:$0xff]
    %v25 = vld [vmem:[%s1 + $0x18] sm:$0xff]
    %v26 = vld [vmem:[%s2] sm:$0xff]
    %v27 = vld [vmem:[%s2 + $0x8] sm:$0xff]
    %v28 = vld [vmem:[%s2 + $0x10] sm:$0xff]
    %v29 = vld [vmem:[%s2 + $0x18] sm:$0xff]
    %31 = vset.pattern.permute.xlu0 0
    %32 = vperm.xlu0 %31, %v26
    %v33 = vpop.permute.xlu0 %32
    %36 = vset.pattern.permute.xlu0 0
    %37 = vperm.xlu0 %36, %v27
    %v38 = vpop.permute.xlu0 %37
    %41 = vset.pattern.permute.xlu0 0
    %42 = vperm.xlu0 %41, %v28
    %v43 = vpop.permute.xlu0 %42
    %46 = vset.pattern.permute.xlu0 0
    %47 = vperm.xlu0 %46, %v29
    %v48 = vpop.permute.xlu0 %47
    %vm50 = vcmask 64512
    %v52 = vsel %vm50, %v22, 0
    %v55 = vsel %vm50, %v23, 0
    %v58 = vsel %vm50, %v24, 0
    %v61 = vsel %vm50, %v25, 0
    %63 = vmatpush.msra.mxu0 0.0
    %64 = vmatpush.msra.mxu0 0.0
    %65 = vmatpush.msra.mxu0 0.0
    %66 = vmatpush.msra.mxu0 0.0
    %67 = vmatpush.msra.mxu0 0.0
    %68 = vmatpush.msra.mxu0 0.0
    %69 = vmatpush.msra.mxu0 0.0
    %70 = vmatpush.msra.mxu0 0.0
    %71 = vmatpush.msra.mxu0 0.0
    %72 = vmatpush.msra.mxu0 0.0
    %73 = vmatpush.msra.mxu0 0.0
    %74 = vmatpush.msra.mxu0 0.0
    %75 = vmatpush.msra.mxu0 0.0
    %76 = vmatpush.msra.mxu0 0.0
    %77 = vmatpush.msra.mxu0 0.0
    %78 = vmatpush.msra.mxu0 %v21
    %79 = vmatmul.f32.gmra.mxu0 %v52
    %v80 = vpop.f32.mrf.mxu0
    %v81 = vadd.f32 %v33, %v80
    %82 = vmatmul.f32.gmra.mxu0 %v55
    %v83 = vpop.f32.mrf.mxu0
    %v84 = vadd.f32 %v38, %v83
    %85 = vmatmul.f32.gmra.mxu0 %v58
    %v86 = vpop.f32.mrf.mxu0
    %v87 = vadd.f32 %v43, %v86
    %88 = vmatmul.f32.gmra.mxu0 %v61
    %v89 = vpop.f32.mrf.mxu0
    %v90 = vadd.f32 %v48, %v89
    %91 = vdwg.mxu0
    %v92 = vmax.f32 %v81, 0.0
    %v93 = vmax.f32 %v84, 0.0
    %v94 = vmax.f32 %v87, 0.0
    %v95 = vmax.f32 %v90, 0.0
    %v96 = vld [vmem:[%s3] sm:$0xff]
    %v97 = vld [vmem:[%s3 + $0x8] sm:$0xff]
    %v98 = vld [vmem:[%s3 + $0x10] sm:$0xff]
    %v99 = vld [vmem:[%s3 + $0x18] sm:$0xff]
    %vm100 = vcmask 261120
    %v102 = vsel %vm100, %v96, 0
    %v105 = vsel %vm100, %v97, 0
    %v108 = vsel %vm100, %v98, 0
    %v111 = vsel %vm100, %v99, 0
    %113 = vmatpush.msra.mxu0 0.0
    %114 = vmatpush.msra.mxu0 0.0
    %115 = vmatpush.msra.mxu0 0.0
    %116 = vmatpush.msra.mxu0 0.0
    %117 = vmatpush.msra.mxu0 0.0
    %118 = vmatpush.msra.mxu0 0.0
    %119 = vmatpush.msra.mxu0 0.0
    %120 = vmatpush.msra.mxu0 0.0
    %121 = vmatpush.msra.mxu0 0.0
    %122 = vmatpush.msra.mxu0 0.0
    %123 = vmatpush.msra.mxu0 0.0
    %124 = vmatpush.msra.mxu0 0.0
    %125 = vmatpush.msra.mxu0 %v95
    %126 = vmatpush.msra.mxu0 %v94
    %127 = vmatpush.msra.mxu0 %v93
    %128 = vmatpush.msra.mxu0 %v92
    %129 = vmatmul.f32.gmra.mxu0 %v102
    %v130 = vpop.f32.mrf.mxu0
    %v131 = vadd.f32 0.0, %v130
    %132 = vmatmul.f32.gmra.mxu0 %v105
    %v133 = vpop.f32.mrf.mxu0
    %v134 = vadd.f32 0.0, %v133
    %135 = vmatmul.f32.gmra.mxu0 %v108
    %v136 = vpop.f32.mrf.mxu0
    %v137 = vadd.f32 0.0, %v136
    %138 = vmatmul.f32.gmra.mxu0 %v111
    %v139 = vpop.f32.mrf.mxu0
    %v140 = vadd.f32 0.0, %v139
    %141 = vdwg.mxu0
    %v142 = vmax.f32 %v131, 0.0
    %v143 = vmax.f32 %v134, 0.0
    %v144 = vmax.f32 %v137, 0.0
    %v145 = vmax.f32 %v140, 0.0
    %v146 = vld [vmem:[%s4] sm:$0xff]
    %v148 = vsel %vm100, %v146, 0
    %150 = vmatpush.msra.mxu0 0.0
    %151 = vmatpush.msra.mxu0 0.0
    %152 = vmatpush.msra.mxu0 0.0
    %153 = vmatpush.msra.mxu0 0.0
    %154 = vmatpush.msra.mxu0 0.0
    %155 = vmatpush.msra.mxu0 0.0
    %156 = vmatpush.msra.mxu0 0.0
    %157 = vmatpush.msra.mxu0 0.0
    %158 = vmatpush.msra.mxu0 0.0
    %159 = vmatpush.msra.mxu0 0.0
    %160 = vmatpush.msra.mxu0 0.0
    %161 = vmatpush.msra.mxu0 0.0
    %162 = vmatpush.msra.mxu0 %v145
    %163 = vmatpush.msra.mxu0 %v144
    %164 = vmatpush.msra.mxu0 %v143
    %165 = vmatpush.msra.mxu0 %v142
    %166 = vmatmul.f32.gmra.mxu0 %v148
    %v167 = vpop.f32.mrf.mxu0
    %v168 = vadd.f32 0.0, %v167
    %169 = vdwg.mxu0
    %170 = vst [vmem:[#allocation2] sm:$0xff] %v168
    // Predicated region
    $region22: #{tpu_custom_call.1} parent=1 // pred_check
      _
    $region23: #{tpu_custom_call.1} parent=1 // pred_check_branch
      %172 = sbr.rel (0) target = $region25
    $region24: #{tpu_custom_call.1} parent=1 // pred_region
      %174 = vsyncadd [#allocation3], 0
      %s176 = sshll.u32 [#allocation2], 4
      %s177 = int_to_ptr.vmem [resolvable:$true] %s176
      %s178 = sshll.u32 %s5, 4
      %s179 = int_to_ptr.hbm [resolvable:$true] %s178
      %181 = dma.vmem_to_hbm [thread:$0]  %s177, 128, %s179, [#allocation3]
    $region25: #{tpu_custom_call.1} parent=1 // pred_fallthru
      _
    // Predicated region
    $region26: #{tpu_custom_call.1} parent=1 // pred_check
      _
    $region27: #{tpu_custom_call.1} parent=1 // pred_check_branch
      %183 = sbr.rel (0) target = $region29
    $region28: #{tpu_custom_call.1} parent=1 // pred_region
      %185 = dma.done [#allocation3], 128
    $region29: #{tpu_custom_call.1} parent=1 // pred_fallthru
      _
    %186 = vsyncpa [#allocation3], 1

</llo_original>
